<compile_context>
chip_gen: v5e
topology: v5e:2x2
jax: 0.10.0
libtpu: 0.0.40
codegen_flags: <defaults>
</compile_context>

<pallas_src>
import jax
import jax.numpy as jnp
from jax.experimental import pallas as pl
from jax.experimental.pallas import tpu as pltpu

EPS = 1e-5


# ----------------------------------------------------------------------------
# The single fused Pallas kernel
# ----------------------------------------------------------------------------
def attention_fused_kernel(xpad_ref, xres_ref, wconv_ref, pc1_ref, g1_ref, b1_ref,
                           ma_ref, ba_ref, pc2_ref, g2_ref, b2_ref, mb_ref, bb_ref,
                           o_ref):
    f32 = jnp.float32

    # ---- cba: 3x3/s2 conv (one folded matmul) + BatchNorm2d (batch stats) + ReLU ----
    y = jnp.dot(xpad_ref[...], wconv_ref[...], preferred_element_type=f32)       # (B, C*S1)
    mu = jnp.dot(jnp.mean(y, axis=0, keepdims=True), pc1_ref[...],
                 preferred_element_type=f32)                                      # per-channel mean
    yc = y - mu
    var = jnp.dot(jnp.mean(yc * yc, axis=0, keepdims=True), pc1_ref[...],
                  preferred_element_type=f32)                                     # biased variance
    y = jnp.maximum(yc * jax.lax.rsqrt(var + EPS) * g1_ref[...] + b1_ref[...], 0.0)

    # ---- ll (Linear∘Linear) ∘ up0 bilinear x2 ∘ up0 1x1-conv: one folded affine map,
    #      then ReLU and the residual add with the module input ----
    z = jnp.dot(y, ma_ref[...], preferred_element_type=f32) + ba_ref[...]         # (B, C*S2)
    z = jnp.maximum(z, 0.0) + xres_ref[...]

    # ---- self.bn (batch stats) ----
    mu2 = jnp.dot(jnp.mean(z, axis=0, keepdims=True), pc2_ref[...],
                  preferred_element_type=f32)
    zc = z - mu2
    var2 = jnp.dot(jnp.mean(zc * zc, axis=0, keepdims=True), pc2_ref[...],
                   preferred_element_type=f32)
    z = zc * jax.lax.rsqrt(var2 + EPS) * g2_ref[...] + b2_ref[...]

    # ---- up1: 1x1 conv (C->T) commuted ahead of the bilinear x2 upsample (both folded
    #      into mb), then softmax across the T channel blocks ----
    T = o_ref.shape[0]
    logits = [jnp.dot(z, mb_ref[t], preferred_element_type=f32) + bb_ref[t]
              for t in range(T)]                                                  # each (B, S3)
    m = logits[0]
    for l in logits[1:]:
        m = jnp.maximum(m, l)
    exps = [jnp.exp(l - m) for l in logits]
    den = exps[0]
    for e in exps[1:]:
        den = den + e
    inv = pl.reciprocal(den, approx=True)
    for t in range(T):
        o_ref[t] = exps[t] * inv                                                  # lane-dense (B, S3) store


# ----------------------------------------------------------------------------
# One-time parameter folding (host-side JAX; runs once, outside the forward pass)
# ----------------------------------------------------------------------------
def bilinear_matrix(n_out, n_in):
    """1-D bilinear interpolation matrix, align_corners=True, shape (n_out, n_in). Rows sum to 1."""
    pos = jnp.arange(n_out, dtype=jnp.float32) * (n_in - 1) / (n_out - 1)
    i0 = jnp.clip(jnp.floor(pos).astype(jnp.int32), 0, n_in - 1)
    i1 = jnp.clip(i0 + 1, 0, n_in - 1)
    frac = pos - i0.astype(jnp.float32)
    return (jax.nn.one_hot(i0, n_in, dtype=jnp.float32) * (1.0 - frac)[:, None]
            + jax.nn.one_hot(i1, n_in, dtype=jnp.float32) * frac[:, None])


def conv3x3_s2_p1_as_matrix(w, H, W):
    """Dense M so that (B, C*(H+2)*(W+2)) @ M == 3x3 stride-2 pad-1 conv, channel-outer flattening."""
    Cout, Cin, _, _ = w.shape
    Hp, Wp = H + 2, W + 2
    Ho, Wo = (H - 1) // 2 + 1, (W - 1) // 2 + 1
    ho = jnp.arange(Ho)[:, None]
    wo = jnp.arange(Wo)[None, :]
    gathers = []
    for kh in range(3):
        for kw in range(3):
            q = ((2 * ho + kh) * Wp + (2 * wo + kw)).reshape(-1)                  # (Ho*Wo,)
            gathers.append(jax.nn.one_hot(q, Hp * Wp, dtype=jnp.float32).T)       # (Hp*Wp, Ho*Wo)
    G = jnp.stack(gathers, axis=0)                                                # (9, Hp*Wp, Ho*Wo)
    M = jnp.einsum("kqp,oik->iqop", G, w.reshape(Cout, Cin, 9))                   # (Ci,HpWp,Co,HoWo)
    return M.reshape(Cin * Hp * Wp, Cout * Ho * Wo), Ho, Wo


def fold_params(p, H, W):
    C = p["conv1_w"].shape[0]
    T = p["up1_w"].shape[0]
    wconv, Ho, Wo = conv3x3_s2_p1_as_matrix(p["conv1_w"], H, W)
    S1, S2, S3 = Ho * Wo, H * W, 4 * H * W
    assert S1 == 12, "after the stride-2 conv h*w must equal 12 (LazyLinear(12) + view)"
    assert (2 * Ho, 2 * Wo) == (H, W), "up0 output must match the input spatial size (residual add)"

    # ll (two Linear(12)) ∘ up0 bilinear x2 ∘ up0 1x1-conv  ->  one affine map (exact: all linear)
    U0 = jnp.kron(bilinear_matrix(2 * Ho, Ho), bilinear_matrix(2 * Wo, Wo)).T     # (S1, S2)
    F = p["lin1_w"].T @ p["lin2_w"].T @ U0                                        # (S1, S2)
    bias_f = (p["lin1_b"] @ p["lin2_w"].T + p["lin2_b"]) @ U0                     # (S2,)
    ma = jnp.kron(p["up0_w"].T, F)                                                # (C*S1, C*S2)
    ba = (p["up0_w"].sum(axis=1)[:, None] * bias_f[None, :]
          + p["up0_b"][:, None]).reshape(1, C * S2)

    # up1 1x1-conv (C->T) commuted ahead of the up1 bilinear x2 upsample; folded per output channel t
    U1 = jnp.kron(bilinear_matrix(2 * H, H), bilinear_matrix(2 * W, W)).T         # (S2, S3)
    mb = jnp.einsum("tc,sk->tcsk", p["up1_w"], U1).reshape(T, C * S2, S3)         # (T, C*S2, S3)
    bb = p["up1_b"].astype(jnp.float32)                                           # (T,) survives the upsample

    return {
        "wconv": wconv,
        "pc1": jnp.kron(jnp.eye(C, dtype=jnp.float32), jnp.ones((S1, S1), jnp.float32) / S1),
        "g1": jnp.repeat(p["bn1_g"], S1)[None, :],
        "b1": jnp.repeat(p["bn1_b"], S1)[None, :],
        "ma": ma,
        "ba": ba,
        "pc2": jnp.kron(jnp.eye(C, dtype=jnp.float32), jnp.ones((S2, S2), jnp.float32) / S2),
        "g2": jnp.repeat(p["bn_g"], S2)[None, :],
        "b2": jnp.repeat(p["bn_b"], S2)[None, :],
        "mb": mb,
        "bb": bb,
    }


def init_params(key, C, T):
    k = jax.random.split(key, 8)
    p = {}
    p["conv1_w"] = 0.2 * jax.random.normal(k[0], (C, C, 3, 3), jnp.float32)   # (out, in, 3, 3)
    p["bn1_g"] = jnp.ones((C,), jnp.float32)
    p["bn1_b"] = jnp.zeros((C,), jnp.float32)
    p["lin1_w"] = 0.2 * jax.random.normal(k[1], (12, 12), jnp.float32)        # (out, in)
    p["lin1_b"] = 0.1 * jax.random.normal(k[2], (12,), jnp.float32)
    p["lin2_w"] = 0.2 * jax.random.normal(k[3], (12, 12), jnp.float32)
    p["lin2_b"] = 0.1 * jax.random.normal(k[4], (12,), jnp.float32)
    p["up0_w"] = 0.2 * jax.random.normal(k[5], (C, C), jnp.float32)           # 1x1 conv (out, in)
    p["up0_b"] = 0.1 * jax.random.normal(k[6], (C,), jnp.float32)
    p["bn_g"] = jnp.ones((C,), jnp.float32)
    p["bn_b"] = jnp.zeros((C,), jnp.float32)
    p["up1_w"] = 0.2 * jax.random.normal(k[7], (T, C), jnp.float32)           # 1x1 conv (out, in)
    p["up1_b"] = 0.05 * jnp.arange(T, dtype=jnp.float32)                      # exercises the bias path
    return p


# ----------------------------------------------------------------------------
# Forward pass: pad + pure reshapes, one fused pallas_call, reshape to NCHW
# ----------------------------------------------------------------------------
@jax.jit
def attention_forward(folded, x):
    B, C, H, W = x.shape
    T, _, S3 = folded["mb"].shape
    xpad = jnp.pad(x, ((0, 0), (0, 0), (1, 1), (1, 1))).reshape(B, -1)        # (B, C*(H+2)*(W+2))
    xres = x.reshape(B, -1)                                                   # (B, C*H*W), pure reshape

    out = pl.pallas_call(
        attention_fused_kernel,
        out_shape=jax.ShapeDtypeStruct((T, B, S3), jnp.float32),
        in_specs=[pl.BlockSpec(memory_space=pltpu.MemorySpace.VMEM)] * 12
        + [pl.BlockSpec(memory_space=pltpu.MemorySpace.SMEM)],
        out_specs=pl.BlockSpec(memory_space=pltpu.MemorySpace.VMEM),
    )(xpad, xres, folded["wconv"], folded["pc1"], folded["g1"], folded["b1"],
      folded["ma"], folded["ba"], folded["pc2"], folded["g2"], folded["b2"],
      folded["mb"], folded["bb"])

    # (T, B, 4*H*W) -> NCHW (B, T, 2H, 2W): one tiny transpose + reshape of the final output.
    return jnp.transpose(out, (1, 0, 2)).reshape(B, T, 2 * H, 2 * W)


# ----------------------------------------------------------------------------
if __name__ == "__main__":
    channels, temporal = 4, 3
    B, H, W = 2, 8, 6   # stride-2 conv -> (4, 3) spatial, 4*3 == 12 as the model's Linear(12)+view require

    key = jax.random.PRNGKey(0)
    kx, kp = jax.random.split(key)
    x = jax.random.normal(kx, (B, channels, H, W), jnp.float32)
    params = init_params(kp, channels, temporal)
    folded = fold_params(params, H, W)          # one-time weight folding, outside the forward pass

    out = attention_forward(folded, x)
    out = jax.block_until_ready(out)

    assert out.shape == (B, temporal, 2 * H, 2 * W), out.shape
    assert bool(jnp.all(jnp.isfinite(out)))
    # softmax over the channel dim sums to 1 (approx reciprocal -> slightly loosened tolerance)
    assert bool(jnp.allclose(out.sum(axis=1), 1.0, atol=5e-3))
    print("KERNEL_OK")
</pallas_src>

<mosaic_0001>
module attributes {stable_mosaic.version = 11 : i64} {
  func.func @attention_fused_kernel(%arg0: memref<2x320xf32, #tpu.memory_space<vmem>>, %arg1: memref<2x192xf32, #tpu.memory_space<vmem>>, %arg2: memref<320x48xf32, #tpu.memory_space<vmem>>, %arg3: memref<48x48xf32, #tpu.memory_space<vmem>>, %arg4: memref<1x48xf32, #tpu.memory_space<vmem>>, %arg5: memref<1x48xf32, #tpu.memory_space<vmem>>, %arg6: memref<48x192xf32, #tpu.memory_space<vmem>>, %arg7: memref<1x192xf32, #tpu.memory_space<vmem>>, %arg8: memref<192x192xf32, #tpu.memory_space<vmem>>, %arg9: memref<1x192xf32, #tpu.memory_space<vmem>>, %arg10: memref<1x192xf32, #tpu.memory_space<vmem>>, %arg11: memref<3x192x192xf32, #tpu.memory_space<vmem>>, %arg12: memref<3xf32, #tpu.memory_space<smem>>, %arg13: memref<3x2x192xf32, #tpu.memory_space<vmem>>) attributes {dimension_semantics = [], scalar_prefetch = 0 : i64, scratch_operands = 0 : i64, tpu.core_type = #tpu.core_type<tc>} {
    %c0 = arith.constant 0 : index
    %c0_0 = arith.constant 0 : index
    %0 = vector.load %arg0[%c0, %c0_0] : memref<2x320xf32, #tpu.memory_space<vmem>>, vector<2x320xf32>
    %c0_1 = arith.constant 0 : index
    %c0_2 = arith.constant 0 : index
    %1 = vector.load %arg2[%c0_1, %c0_2] : memref<320x48xf32, #tpu.memory_space<vmem>>, vector<320x48xf32>
    %cst = arith.constant dense<0.000000e+00> : vector<2x48xf32>
    %2 = tpu.matmul %0, %1, %cst {dimension_numbers = #tpu.dot_dimension_numbers<[1], [0], [0], [1], [0, 0, 1, 1], [], []>} : vector<2x320xf32>, vector<320x48xf32>, vector<2x48xf32> -> vector<2x48xf32>
    %cst_3 = arith.constant dense<0.000000e+00> : vector<48xf32>
    %3 = vector.multi_reduction <add>, %2, %cst_3 [0] : vector<2x48xf32> to vector<48xf32>
    %4 = vector.shape_cast %3 : vector<48xf32> to vector<1x48xf32>
    %cst_4 = arith.constant 2.000000e+00 : f32
    %5 = vector.broadcast %cst_4 : f32 to vector<1x48xf32>
    %6 = arith.divf %4, %5 : vector<1x48xf32>
    %c0_5 = arith.constant 0 : index
    %c0_6 = arith.constant 0 : index
    %7 = vector.load %arg3[%c0_5, %c0_6] : memref<48x48xf32, #tpu.memory_space<vmem>>, vector<48x48xf32>
    %cst_7 = arith.constant dense<0.000000e+00> : vector<1x48xf32>
    %8 = tpu.matmul %6, %7, %cst_7 {dimension_numbers = #tpu.dot_dimension_numbers<[1], [0], [0], [1], [0, 0, 1, 1], [], []>} : vector<1x48xf32>, vector<48x48xf32>, vector<1x48xf32> -> vector<1x48xf32>
    %9 = vector.broadcast %8 : vector<1x48xf32> to vector<2x48xf32>
    %10 = arith.subf %2, %9 : vector<2x48xf32>
    %11 = arith.mulf %10, %10 : vector<2x48xf32>
    %cst_8 = arith.constant dense<0.000000e+00> : vector<48xf32>
    %12 = vector.multi_reduction <add>, %11, %cst_8 [0] : vector<2x48xf32> to vector<48xf32>
    %13 = vector.shape_cast %12 : vector<48xf32> to vector<1x48xf32>
    %cst_9 = arith.constant 2.000000e+00 : f32
    %14 = vector.broadcast %cst_9 : f32 to vector<1x48xf32>
    %15 = arith.divf %13, %14 : vector<1x48xf32>
    %c0_10 = arith.constant 0 : index
    %c0_11 = arith.constant 0 : index
    %16 = vector.load %arg3[%c0_10, %c0_11] : memref<48x48xf32, #tpu.memory_space<vmem>>, vector<48x48xf32>
    %cst_12 = arith.constant dense<0.000000e+00> : vector<1x48xf32>
    %17 = tpu.matmul %15, %16, %cst_12 {dimension_numbers = #tpu.dot_dimension_numbers<[1], [0], [0], [1], [0, 0, 1, 1], [], []>} : vector<1x48xf32>, vector<48x48xf32>, vector<1x48xf32> -> vector<1x48xf32>
    %cst_13 = arith.constant 9.99999974E-6 : f32
    %18 = vector.broadcast %cst_13 : f32 to vector<1x48xf32>
    %19 = arith.addf %17, %18 : vector<1x48xf32>
    %20 = math.rsqrt %19 : vector<1x48xf32>
    %21 = vector.broadcast %20 : vector<1x48xf32> to vector<2x48xf32>
    %22 = arith.mulf %10, %21 : vector<2x48xf32>
    %c0_14 = arith.constant 0 : index
    %c0_15 = arith.constant 0 : index
    %23 = vector.load %arg4[%c0_14, %c0_15] : memref<1x48xf32, #tpu.memory_space<vmem>>, vector<1x48xf32>
    %24 = vector.broadcast %23 : vector<1x48xf32> to vector<2x48xf32>
    %25 = arith.mulf %22, %24 : vector<2x48xf32>
    %c0_16 = arith.constant 0 : index
    %c0_17 = arith.constant 0 : index
    %26 = vector.load %arg5[%c0_16, %c0_17] : memref<1x48xf32, #tpu.memory_space<vmem>>, vector<1x48xf32>
    %27 = vector.broadcast %26 : vector<1x48xf32> to vector<2x48xf32>
    %28 = arith.addf %25, %27 : vector<2x48xf32>
    %cst_18 = arith.constant 0.000000e+00 : f32
    %29 = vector.broadcast %cst_18 : f32 to vector<2x48xf32>
    %30 = arith.maximumf %28, %29 : vector<2x48xf32>
    %c0_19 = arith.constant 0 : index
    %c0_20 = arith.constant 0 : index
    %31 = vector.load %arg6[%c0_19, %c0_20] : memref<48x192xf32, #tpu.memory_space<vmem>>, vector<48x192xf32>
    %cst_21 = arith.constant dense<0.000000e+00> : vector<2x192xf32>
    %32 = tpu.matmul %30, %31, %cst_21 {dimension_numbers = #tpu.dot_dimension_numbers<[1], [0], [0], [1], [0, 0, 1, 1], [], []>} : vector<2x48xf32>, vector<48x192xf32>, vector<2x192xf32> -> vector<2x192xf32>
    %c0_22 = arith.constant 0 : index
    %c0_23 = arith.constant 0 : index
    %33 = vector.load %arg7[%c0_22, %c0_23] : memref<1x192xf32, #tpu.memory_space<vmem>>, vector<1x192xf32>
    %34 = vector.broadcast %33 : vector<1x192xf32> to vector<2x192xf32>
    %35 = arith.addf %32, %34 : vector<2x192xf32>
    %cst_24 = arith.constant 0.000000e+00 : f32
    %36 = vector.broadcast %cst_24 : f32 to vector<2x192xf32>
    %37 = arith.maximumf %35, %36 : vector<2x192xf32>
    %c0_25 = arith.constant 0 : index
    %c0_26 = arith.constant 0 : index
    %38 = vector.load %arg1[%c0_25, %c0_26] : memref<2x192xf32, #tpu.memory_space<vmem>>, vector<2x192xf32>
    %39 = arith.addf %37, %38 : vector<2x192xf32>
    %cst_27 = arith.constant dense<0.000000e+00> : vector<192xf32>
    %40 = vector.multi_reduction <add>, %39, %cst_27 [0] : vector<2x192xf32> to vector<192xf32>
    %41 = vector.shape_cast %40 : vector<192xf32> to vector<1x192xf32>
    %cst_28 = arith.constant 2.000000e+00 : f32
    %42 = vector.broadcast %cst_28 : f32 to vector<1x192xf32>
    %43 = arith.divf %41, %42 : vector<1x192xf32>
    %c0_29 = arith.constant 0 : index
    %c0_30 = arith.constant 0 : index
    %44 = vector.load %arg8[%c0_29, %c0_30] : memref<192x192xf32, #tpu.memory_space<vmem>>, vector<192x192xf32>
    %cst_31 = arith.constant dense<0.000000e+00> : vector<1x192xf32>
    %45 = tpu.matmul %43, %44, %cst_31 {dimension_numbers = #tpu.dot_dimension_numbers<[1], [0], [0], [1], [0, 0, 1, 1], [], []>} : vector<1x192xf32>, vector<192x192xf32>, vector<1x192xf32> -> vector<1x192xf32>
    %46 = vector.broadcast %45 : vector<1x192xf32> to vector<2x192xf32>
    %47 = arith.subf %39, %46 : vector<2x192xf32>
    %48 = arith.mulf %47, %47 : vector<2x192xf32>
    %cst_32 = arith.constant dense<0.000000e+00> : vector<192xf32>
    %49 = vector.multi_reduction <add>, %48, %cst_32 [0] : vector<2x192xf32> to vector<192xf32>
    %50 = vector.shape_cast %49 : vector<192xf32> to vector<1x192xf32>
    %cst_33 = arith.constant 2.000000e+00 : f32
    %51 = vector.broadcast %cst_33 : f32 to vector<1x192xf32>
    %52 = arith.divf %50, %51 : vector<1x192xf32>
    %c0_34 = arith.constant 0 : index
    %c0_35 = arith.constant 0 : index
    %53 = vector.load %arg8[%c0_34, %c0_35] : memref<192x192xf32, #tpu.memory_space<vmem>>, vector<192x192xf32>
    %cst_36 = arith.constant dense<0.000000e+00> : vector<1x192xf32>
    %54 = tpu.matmul %52, %53, %cst_36 {dimension_numbers = #tpu.dot_dimension_numbers<[1], [0], [0], [1], [0, 0, 1, 1], [], []>} : vector<1x192xf32>, vector<192x192xf32>, vector<1x192xf32> -> vector<1x192xf32>
    %cst_37 = arith.constant 9.99999974E-6 : f32
    %55 = vector.broadcast %cst_37 : f32 to vector<1x192xf32>
    %56 = arith.addf %54, %55 : vector<1x192xf32>
    %57 = math.rsqrt %56 : vector<1x192xf32>
    %58 = vector.broadcast %57 : vector<1x192xf32> to vector<2x192xf32>
    %59 = arith.mulf %47, %58 : vector<2x192xf32>
    %c0_38 = arith.constant 0 : index
    %c0_39 = arith.constant 0 : index
    %60 = vector.load %arg9[%c0_38, %c0_39] : memref<1x192xf32, #tpu.memory_space<vmem>>, vector<1x192xf32>
    %61 = vector.broadcast %60 : vector<1x192xf32> to vector<2x192xf32>
    %62 = arith.mulf %59, %61 : vector<2x192xf32>
    %c0_40 = arith.constant 0 : index
    %c0_41 = arith.constant 0 : index
    %63 = vector.load %arg10[%c0_40, %c0_41] : memref<1x192xf32, #tpu.memory_space<vmem>>, vector<1x192xf32>
    %64 = vector.broadcast %63 : vector<1x192xf32> to vector<2x192xf32>
    %65 = arith.addf %62, %64 : vector<2x192xf32>
    %c0_42 = arith.constant 0 : index
    %c0_43 = arith.constant 0 : index
    %c0_44 = arith.constant 0 : index
    %66 = vector.load %arg11[%c0_42, %c0_43, %c0_44] : memref<3x192x192xf32, #tpu.memory_space<vmem>>, vector<1x192x192xf32>
    %67 = vector.shape_cast %66 : vector<1x192x192xf32> to vector<192x192xf32>
    %cst_45 = arith.constant dense<0.000000e+00> : vector<2x192xf32>
    %68 = tpu.matmul %65, %67, %cst_45 {dimension_numbers = #tpu.dot_dimension_numbers<[1], [0], [0], [1], [0, 0, 1, 1], [], []>} : vector<2x192xf32>, vector<192x192xf32>, vector<2x192xf32> -> vector<2x192xf32>
    %c0_46 = arith.constant 0 : index
    %69 = memref.load %arg12[%c0_46] : memref<3xf32, #tpu.memory_space<smem>>
    %70 = vector.broadcast %69 : f32 to vector<2x192xf32>
    %71 = arith.addf %68, %70 : vector<2x192xf32>
    %c1 = arith.constant 1 : index
    %c0_47 = arith.constant 0 : index
    %c0_48 = arith.constant 0 : index
    %72 = vector.load %arg11[%c1, %c0_47, %c0_48] : memref<3x192x192xf32, #tpu.memory_space<vmem>>, vector<1x192x192xf32>
    %73 = vector.shape_cast %72 : vector<1x192x192xf32> to vector<192x192xf32>
    %cst_49 = arith.constant dense<0.000000e+00> : vector<2x192xf32>
    %74 = tpu.matmul %65, %73, %cst_49 {dimension_numbers = #tpu.dot_dimension_numbers<[1], [0], [0], [1], [0, 0, 1, 1], [], []>} : vector<2x192xf32>, vector<192x192xf32>, vector<2x192xf32> -> vector<2x192xf32>
    %c1_50 = arith.constant 1 : index
    %75 = memref.load %arg12[%c1_50] : memref<3xf32, #tpu.memory_space<smem>>
    %76 = vector.broadcast %75 : f32 to vector<2x192xf32>
    %77 = arith.addf %74, %76 : vector<2x192xf32>
    %c2 = arith.constant 2 : index
    %c0_51 = arith.constant 0 : index
    %c0_52 = arith.constant 0 : index
    %78 = vector.load %arg11[%c2, %c0_51, %c0_52] : memref<3x192x192xf32, #tpu.memory_space<vmem>>, vector<1x192x192xf32>
    %79 = vector.shape_cast %78 : vector<1x192x192xf32> to vector<192x192xf32>
    %cst_53 = arith.constant dense<0.000000e+00> : vector<2x192xf32>
    %80 = tpu.matmul %65, %79, %cst_53 {dimension_numbers = #tpu.dot_dimension_numbers<[1], [0], [0], [1], [0, 0, 1, 1], [], []>} : vector<2x192xf32>, vector<192x192xf32>, vector<2x192xf32> -> vector<2x192xf32>
    %c2_54 = arith.constant 2 : index
    %81 = memref.load %arg12[%c2_54] : memref<3xf32, #tpu.memory_space<smem>>
    %82 = vector.broadcast %81 : f32 to vector<2x192xf32>
    %83 = arith.addf %80, %82 : vector<2x192xf32>
    %84 = arith.maximumf %71, %77 : vector<2x192xf32>
    %85 = arith.maximumf %84, %83 : vector<2x192xf32>
    %86 = arith.subf %71, %85 : vector<2x192xf32>
    %87 = math.exp %86 : vector<2x192xf32>
    %88 = arith.subf %77, %85 : vector<2x192xf32>
    %89 = math.exp %88 : vector<2x192xf32>
    %90 = arith.subf %83, %85 : vector<2x192xf32>
    %91 = math.exp %90 : vector<2x192xf32>
    %92 = arith.addf %87, %89 : vector<2x192xf32>
    %93 = arith.addf %92, %91 : vector<2x192xf32>
    %94 = tpu.reciprocal %93 {approx = true} : vector<2x192xf32> -> vector<2x192xf32>
    %95 = arith.mulf %87, %94 : vector<2x192xf32>
    %c0_55 = arith.constant 0 : index
    %c0_56 = arith.constant 0 : index
    %c0_57 = arith.constant 0 : index
    %96 = vector.load %arg13[%c0_55, %c0_56, %c0_57] : memref<3x2x192xf32, #tpu.memory_space<vmem>>, vector<1x2x192xf32>
    %97 = vector.shape_cast %96 : vector<1x2x192xf32> to vector<2x192xf32>
    %98 = vector.shape_cast %95 : vector<2x192xf32> to vector<1x2x192xf32>
    tpu.vector_store %arg13[%c0_55, %c0_56, %c0_57], %98 {strides = array<i32>} : memref<3x2x192xf32, #tpu.memory_space<vmem>>, vector<1x2x192xf32>,
    %99 = arith.mulf %89, %94 : vector<2x192xf32>
    %c1_58 = arith.constant 1 : index
    %c0_59 = arith.constant 0 : index
    %c0_60 = arith.constant 0 : index
    %100 = vector.load %arg13[%c1_58, %c0_59, %c0_60] : memref<3x2x192xf32, #tpu.memory_space<vmem>>, vector<1x2x192xf32>
    %101 = vector.shape_cast %100 : vector<1x2x192xf32> to vector<2x192xf32>
    %102 = vector.shape_cast %99 : vector<2x192xf32> to vector<1x2x192xf32>
    tpu.vector_store %arg13[%c1_58, %c0_59, %c0_60], %102 {strides = array<i32>} : memref<3x2x192xf32, #tpu.memory_space<vmem>>, vector<1x2x192xf32>,
    %103 = arith.mulf %91, %94 : vector<2x192xf32>
    %c2_61 = arith.constant 2 : index
    %c0_62 = arith.constant 0 : index
    %c0_63 = arith.constant 0 : index
    %104 = vector.load %arg13[%c2_61, %c0_62, %c0_63] : memref<3x2x192xf32, #tpu.memory_space<vmem>>, vector<1x2x192xf32>
    %105 = vector.shape_cast %104 : vector<1x2x192xf32> to vector<2x192xf32>
    %106 = vector.shape_cast %103 : vector<2x192xf32> to vector<1x2x192xf32>
    tpu.vector_store %arg13[%c2_61, %c0_62, %c0_63], %106 {strides = array<i32>} : memref<3x2x192xf32, #tpu.memory_space<vmem>>, vector<1x2x192xf32>,
    return
  }
}

</mosaic_0001>

<llo_original>
// kernel: attention_forward.1
$region0: #{attention_forward.1}
  #allocation0 [shape = 'u32[]', space=smem, size = 0x4, offset = 0x4, fixed_abs, tag = 'smem constant byte address 0x4 - core index']
  #allocation1 [shape = 'u32[72,128]{1,0:T(1,128)}', space=vmem, size = 0x9000, scoped, tag = 'internal scratch']
  %s0 = inlined_call_operand.vmem [shape: f32[2,320], index: 0, kind: input, shape index: {}]
  %s1 = inlined_call_operand.vmem [shape: f32[2,192], index: 1, kind: input, shape index: {}]
  %s2 = inlined_call_operand.vmem [shape: f32[320,48], index: 2, kind: input, shape index: {}]
  %s3 = inlined_call_operand.vmem [shape: f32[48,48], index: 3, kind: input, shape index: {}]
  %s4 = inlined_call_operand.vmem [shape: f32[1,48], index: 4, kind: input, shape index: {}]
  %s5 = inlined_call_operand.vmem [shape: f32[1,48], index: 5, kind: input, shape index: {}]
  %s6 = inlined_call_operand.vmem [shape: f32[48,192], index: 6, kind: input, shape index: {}]
  %s7 = inlined_call_operand.vmem [shape: f32[1,192], index: 7, kind: input, shape index: {}]
  %s8 = inlined_call_operand.vmem [shape: f32[192,192], index: 8, kind: input, shape index: {}]
  %s9 = inlined_call_operand.vmem [shape: f32[1,192], index: 9, kind: input, shape index: {}]
  %s10 = inlined_call_operand.vmem [shape: f32[1,192], index: 10, kind: input, shape index: {}]
  %s11 = inlined_call_operand.hbm [shape: f32[3,192,192], index: 11, kind: input, shape index: {}]
  %s12 = inlined_call_operand.vmem [shape: f32[3], index: 12, kind: input, shape index: {}]
  %s13 = inlined_call_operand.vmem [shape: f32[3,2,192], index: 13, kind: output, shape index: {}]
  %s14 = sld [smem:[#allocation0]]
  $region70: #{attention_forward.1} parent=0
    _
  %s16 = ssub.s32 1, %s14
  %s17 = scalar_select 0, %s16, %s14
  $region1: #{attention_forward.1} parent=0
    #allocation2 [shape = 'u8[589824]{0}', space=vmem, size = 0x90000, scoped, tag = 'input window, operand 11, single buffered']
    #allocation3 [shape = 's32[1]{0}', space=sflag, size = 0x4, scoped, tag = 'scoped memory for attention_forward.1']
    #allocation4 [shape = 's32[1]{0}', space=sflag, size = 0x4, scoped, tag = 'scoped memory for attention_forward.1']
    #allocation5 [shape = 'u8[512]{0}', space=smem, size = 0x200, scoped, tag = 'input window, operand 12, single buffered']
    %18 = vsyncpa [#allocation3], 0
    %19 = vsyncpa [#allocation4], 0
    // Predicated region
    $region2: #{attention_forward.1} parent=1 // pred_check
      _
    $region3: #{attention_forward.1} parent=1 // pred_check_branch
      %21 = sbr.rel (0) target = $region5
    $region4: #{attention_forward.1} parent=1 // pred_region
      _
    $region5: #{attention_forward.1} parent=1 // pred_fallthru
      _
    // Predicated region
    $region6: #{attention_forward.1} parent=1 // pred_check
      _
    $region7: #{attention_forward.1} parent=1 // pred_check_branch
      %23 = sbr.rel (0) target = $region9
    $region8: #{attention_forward.1} parent=1 // pred_region
      _
    $region9: #{attention_forward.1} parent=1 // pred_fallthru
      _
    // Predicated region
    $region10: #{attention_forward.1} parent=1 // pred_check
      _
    $region11: #{attention_forward.1} parent=1 // pred_check_branch
      %25 = sbr.rel (0) target = $region13
    $region12: #{attention_forward.1} parent=1 // pred_region
      _
    $region13: #{attention_forward.1} parent=1 // pred_fallthru
      _
    // Predicated region
    $region14: #{attention_forward.1} parent=1 // pred_check
      _
    $region15: #{attention_forward.1} parent=1 // pred_check_branch
      %27 = sbr.rel (0) target = $region17
    $region16: #{attention_forward.1} parent=1 // pred_region
      _
    $region17: #{attention_forward.1} parent=1 // pred_fallthru
      _
    // Predicated region
    $region18: #{attention_forward.1} parent=1 // pred_check
      _
    $region19: #{attention_forward.1} parent=1 // pred_check_branch
      %29 = sbr.rel (0) target = $region21
    $region20: #{attention_forward.1} parent=1 // pred_region
      _
    $region21: #{attention_forward.1} parent=1 // pred_fallthru
      _
    // Predicated region
    $region22: #{attention_forward.1} parent=1 // pred_check
      _
    $region23: #{attention_forward.1} parent=1 // pred_check_branch
      %31 = sbr.rel (0) target = $region25
    $region24: #{attention_forward.1} parent=1 // pred_region
      _
    $region25: #{attention_forward.1} parent=1 // pred_fallthru
      _
    // Predicated region
    $region26: #{attention_forward.1} parent=1 // pred_check
      _
    $region27: #{attention_forward.1} parent=1 // pred_check_branch
      %33 = sbr.rel (0) target = $region29
    $region28: #{attention_forward.1} parent=1 // pred_region
      _
    $region29: #{attention_forward.1} parent=1 // pred_fallthru
      _
    // Predicated region
    $region30: #{attention_forward.1} parent=1 // pred_check
      _
    $region31: #{attention_forward.1} parent=1 // pred_check_branch
      %35 = sbr.rel (0) target = $region33
    $region32: #{attention_forward.1} parent=1 // pred_region
      _
    $region33: #{attention_forward.1} parent=1 // pred_fallthru
      _
    // Predicated region
    $region34: #{attention_forward.1} parent=1 // pred_check
      _
    $region35: #{attention_forward.1} parent=1 // pred_check_branch
      %37 = sbr.rel (0) target = $region37
    $region36: #{attention_forward.1} parent=1 // pred_region
      _
    $region37: #{attention_forward.1} parent=1 // pred_fallthru
      _
    // Predicated region
    $region38: #{attention_forward.1} parent=1 // pred_check
      _
    $region39: #{attention_forward.1} parent=1 // pred_check_branch
      %39 = sbr.rel (0) target = $region41
    $region40: #{attention_forward.1} parent=1 // pred_region
      _
    $region41: #{attention_forward.1} parent=1 // pred_fallthru
      _
    // Predicated region
    $region42: #{attention_forward.1} parent=1 // pred_check
      _
    $region43: #{attention_forward.1} parent=1 // pred_check_branch
      %41 = sbr.rel (0) target = $region45
    $region44: #{attention_forward.1} parent=1 // pred_region
      _
    $region45: #{attention_forward.1} parent=1 // pred_fallthru
      _
    // Predicated region
    $region46: #{attention_forward.1} parent=1 // pred_check
      _
    $region47: #{attention_forward.1} parent=1 // pred_check_branch
      %43 = sbr.rel (0) target = $region49
    $region48: #{attention_forward.1} parent=1 // pred_region
      %45 = vsyncadd [#allocation3], 0
      %s46 = sshll.u32 %s11, 4
      %s47 = int_to_ptr.hbm [resolvable:$true] %s46
      %s48 = sshll.u32 [#allocation2], 4
      %s49 = int_to_ptr.vmem [resolvable:$true] %s48
      %54 = dma.hbm_to_vmem [thread:$0]  %s47, 18432, %s49, [#allocation3], 256, 256, 16
    $region49: #{attention_forward.1} parent=1 // pred_fallthru
      _
    // Predicated region
    $region50: #{attention_forward.1} parent=1 // pred_check
      _
    $region51: #{attention_forward.1} parent=1 // pred_check_branch
      %56 = sbr.rel (0) target = $region53
    $region52: #{attention_forward.1} parent=1 // pred_region
      %58 = vsyncadd [#allocation4], 0
      %s60 = sshll.u32 %s12, 4
      %s61 = int_to_ptr.vmem [resolvable:$true] %s60
      %63 = dma.vmem_to_smem %s61, 16, [#allocation5], [#allocation4]
    $region53: #{attention_forward.1} parent=1 // pred_fallthru
      _
    // Predicated region
    $region54: #{attention_forward.1} parent=1 // pred_check
      _
    $region55: #{attention_forward.1} parent=1 // pred_check_branch
      %65 = sbr.rel (0) target = $region57
    $region56: #{attention_forward.1} parent=1 // pred_region
      %67 = dma.done [#allocation3], 18432
    $region57: #{attention_forward.1} parent=1 // pred_fallthru
      _
    // Predicated region
    $region58: #{attention_forward.1} parent=1 // pred_check
      _
    $region59: #{attention_forward.1} parent=1 // pred_check_branch
      %69 = sbr.rel (0) target = $region61
    $region60: #{attention_forward.1} parent=1 // pred_region
      %71 = dma.done [#allocation4], 16
    $region61: #{attention_forward.1} parent=1 // pred_fallthru
      _
    %72 = sfence
    %v73 = vld [vmem:[%s0] sm:$0x3f]
    %v74 = vld [vmem:[%s2] sm:$0xff]
    %v75 = vld [vmem:[%s2 + $0x8] sm:$0xff]
    %v76 = vld [vmem:[%s2 + $0x10] sm:$0xff]
    %v77 = vld [vmem:[%s2 + $0x18] sm:$0xff]
    %v78 = vld [vmem:[%s2 + $0x20] sm:$0xff]
    %v79 = vld [vmem:[%s2 + $0x28] sm:$0xff]
    %v80 = vld [vmem:[%s2 + $0x30] sm:$0xff]
    %v81 = vld [vmem:[%s2 + $0x38] sm:$0xff]
    %v82 = vld [vmem:[%s2 + $0x40] sm:$0xff]
    %v83 = vld [vmem:[%s2 + $0x48] sm:$0xff]
    %v84 = vld [vmem:[%s2 + $0x50] sm:$0xff]
    %v85 = vld [vmem:[%s2 + $0x58] sm:$0xff]
    %v86 = vld [vmem:[%s2 + $0x60] sm:$0xff]
    %v87 = vld [vmem:[%s2 + $0x68] sm:$0xff]
    %v88 = vld [vmem:[%s2 + $0x70] sm:$0xff]
    %v89 = vld [vmem:[%s2 + $0x78] sm:$0xff]
    %v90 = vld [vmem:[%s2 + $0x80] sm:$0xff]
    %v91 = vld [vmem:[%s2 + $0x88] sm:$0xff]
    %v92 = vld [vmem:[%s2 + $0x90] sm:$0xff]
    %v93 = vld [vmem:[%s2 + $0x98] sm:$0xff]
    %v94 = vld [vmem:[%s2 + $0xa0] sm:$0xff]
    %v95 = vld [vmem:[%s2 + $0xa8] sm:$0xff]
    %v96 = vld [vmem:[%s2 + $0xb0] sm:$0xff]
    %v97 = vld [vmem:[%s2 + $0xb8] sm:$0xff]
    %v98 = vld [vmem:[%s2 + $0xc0] sm:$0xff]
    %v99 = vld [vmem:[%s2 + $0xc8] sm:$0xff]
    %v100 = vld [vmem:[%s2 + $0xd0] sm:$0xff]
    %v101 = vld [vmem:[%s2 + $0xd8] sm:$0xff]
    %v102 = vld [vmem:[%s2 + $0xe0] sm:$0xff]
    %v103 = vld [vmem:[%s2 + $0xe8] sm:$0xff]
    %v104 = vld [vmem:[%s2 + $0xf0] sm:$0xff]
    %v105 = vld [vmem:[%s2 + $0xf8] sm:$0xff]
    %v106 = vld [vmem:[%s2 + $0x100] sm:$0xff]
    %v107 = vld [vmem:[%s2 + $0x108] sm:$0xff]
    %v108 = vld [vmem:[%s2 + $0x110] sm:$0xff]
    %v109 = vld [vmem:[%s2 + $0x118] sm:$0xff]
    %v110 = vld [vmem:[%s2 + $0x120] sm:$0xff]
    %v111 = vld [vmem:[%s2 + $0x128] sm:$0xff]
    %v112 = vld [vmem:[%s2 + $0x130] sm:$0xff]
    %v113 = vld [vmem:[%s2 + $0x138] sm:$0xff]
    %115 = vst [vmem:[#allocation1] ss:$4 sm:$0xff] %v73
    %v116 = vld.sshfl [vmem:[#allocation1] sm:$0xff pattern:$0x73625140]
    %v117 = vld.sshfl [vmem:[#allocation1 + $0x8] sm:$0xff pattern:$0x73625140]
    %v118 = vld.sshfl [vmem:[#allocation1 + $0x10] sm:$0xff pattern:$0x73625140]
    %vm121 = vcmask 523264
    %v122 = vsel %vm121, %v118, 0
    %124 = vmatpush.msra.mxu0 %v89
    %125 = vmatpush.msra.mxu0 %v88
    %126 = vmatpush.msra.mxu0 %v87
    %127 = vmatpush.msra.mxu0 %v86
    %128 = vmatpush.msra.mxu0 %v85
    %129 = vmatpush.msra.mxu0 %v84
    %130 = vmatpush.msra.mxu0 %v83
    %131 = vmatpush.msra.mxu0 %v82
    %132 = vmatpush.msra.mxu0 %v81
    %133 = vmatpush.msra.mxu0 %v80
    %134 = vmatpush.msra.mxu0 %v79
    %135 = vmatpush.msra.mxu0 %v78
    %136 = vmatpush.msra.mxu0 %v77
    %137 = vmatpush.msra.mxu0 %v76
    %138 = vmatpush.msra.mxu0 %v75
    %139 = vmatpush.msra.mxu0 %v74
    %140 = vmatmul.f32.gmra.mxu0 %v116
    %v141 = vpop.f32.mrf.mxu0
    %v142 = vadd.f32 0.0, %v141
    %143 = vdwg.mxu0
    %144 = vmatpush.msra.mxu0 %v105
    %145 = vmatpush.msra.mxu0 %v104
    %146 = vmatpush.msra.mxu0 %v103
    %147 = vmatpush.msra.mxu0 %v102
    %148 = vmatpush.msra.mxu0 %v101
    %149 = vmatpush.msra.mxu0 %v100
    %150 = vmatpush.msra.mxu0 %v99
    %151 = vmatpush.msra.mxu0 %v98
    %152 = vmatpush.msra.mxu0 %v97
    %153 = vmatpush.msra.mxu0 %v96
    %154 = vmatpush.msra.mxu0 %v95
    %155 = vmatpush.msra.mxu0 %v94
    %156 = vmatpush.msra.mxu0 %v93
    %157 = vmatpush.msra.mxu0 %v92
    %158 = vmatpush.msra.mxu0 %v91
    %159 = vmatpush.msra.mxu0 %v90
    %160 = vmatmul.f32.gmra.mxu0 %v117
    %v161 = vpop.f32.mrf.mxu0
    %v162 = vadd.f32 %v142, %v161
    %163 = vdwg.mxu0
    %164 = vmatpush.msra.mxu0 0.0
    %165 = vmatpush.msra.mxu0 0.0
    %166 = vmatpush.msra.mxu0 0.0
    %167 = vmatpush.msra.mxu0 0.0
    %168 = vmatpush.msra.mxu0 0.0
    %169 = vmatpush.msra.mxu0 0.0
    %170 = vmatpush.msra.mxu0 0.0
    %171 = vmatpush.msra.mxu0 0.0
    %172 = vmatpush.msra.mxu0 %v113
    %173 = vmatpush.msra.mxu0 %v112
    %174 = vmatpush.msra.mxu0 %v111
    %175 = vmatpush.msra.mxu0 %v110
    %176 = vmatpush.msra.mxu0 %v109
    %177 = vmatpush.msra.mxu0 %v108
    %178 = vmatpush.msra.mxu0 %v107
    %179 = vmatpush.msra.mxu0 %v106
    %180 = vmatmul.f32.gmra.mxu0 %v122
    %v181 = vpop.f32.mrf.mxu0
    %v182 = vadd.f32 %v162, %v181
    %183 = vdwg.mxu0
    %vm184 = vcmask 386048
    %v185 = vsel %vm184, %v182, 0.0
    %v186 = vrot.slane %v185, 4
    %v187 = vadd.f32 %v185, %v186
    %v188 = vrot.slane %v187, 2
    %v189 = vadd.f32 %v187, %v188
    %v190 = vrot.slane %v189, 1
    %v191 = vadd.f32 %v189, %v190
    %v192 = vrcp.pop 2.0
    %v193 = vmul.f32 2.0, %v192
    %v194 = vsub.f32 1.0, %v193
    %v195 = vmul.f32 %v192, %v194
    %v196 = vadd.f32 %v192, %v195
    %vm197 = vweird.f32 %v192
    %v198 = vsel %vm197, %v192, %v196
    %v199 = vmul.f32 %v191, %v198
    %v200 = vld [vmem:[%s3] sm:$0xff]
    %v201 = vld [vmem:[%s3 + $0x8] sm:$0xff]
    %v202 = vld [vmem:[%s3 + $0x10] sm:$0xff]
    %v203 = vld [vmem:[%s3 + $0x18] sm:$0xff]
    %v204 = vld [vmem:[%s3 + $0x20] sm:$0xff]
    %v205 = vld [vmem:[%s3 + $0x28] sm:$0xff]
    %vm206 = vcmask 392192
    %v208 = vsel %vm206, %v199, 0
    %210 = vmatpush.msra.mxu0 0.0
    %211 = vmatpush.msra.mxu0 0.0
    %212 = vmatpush.msra.mxu0 0.0
    %213 = vmatpush.msra.mxu0 0.0
    %214 = vmatpush.msra.mxu0 0.0
    %215 = vmatpush.msra.mxu0 0.0
    %216 = vmatpush.msra.mxu0 0.0
    %217 = vmatpush.msra.mxu0 0.0
    %218 = vmatpush.msra.mxu0 0.0
    %219 = vmatpush.msra.mxu0 0.0
    %220 = vmatpush.msra.mxu0 %v205
    %221 = vmatpush.msra.mxu0 %v204
    %222 = vmatpush.msra.mxu0 %v203
    %223 = vmatpush.msra.mxu0 %v202
    %224 = vmatpush.msra.mxu0 %v201
    %225 = vmatpush.msra.mxu0 %v200
    %226 = vmatmul.f32.gmra.mxu0 %v208
    %v227 = vpop.f32.mrf.mxu0
    %v228 = vadd.f32 0.0, %v227
    %229 = vdwg.mxu0
    %v230 = vperm.slane %v228, 0
    %v231 = vsub.f32 %v182, %v230
    %v232 = vmul.f32 %v231, %v231
    %v233 = vsel %vm184, %v232, 0.0
    %v234 = vrot.slane %v233, 4
    %v235 = vadd.f32 %v233, %v234
    %v236 = vrot.slane %v235, 2
    %v237 = vadd.f32 %v235, %v236
    %v238 = vrot.slane %v237, 1
    %v239 = vadd.f32 %v237, %v238
    %v240 = vmul.f32 %v239, %v198
    %v242 = vsel %vm206, %v240, 0
    %244 = vmatpush.msra.mxu0 0.0
    %245 = vmatpush.msra.mxu0 0.0
    %246 = vmatpush.msra.mxu0 0.0
    %247 = vmatpush.msra.mxu0 0.0
    %248 = vmatpush.msra.mxu0 0.0
    %249 = vmatpush.msra.mxu0 0.0
    %250 = vmatpush.msra.mxu0 0.0
    %251 = vmatpush.msra.mxu0 0.0
    %252 = vmatpush.msra.mxu0 0.0
    %253 = vmatpush.msra.mxu0 0.0
    %254 = vmatpush.msra.mxu0 %v205
    %255 = vmatpush.msra.mxu0 %v204
    %256 = vmatpush.msra.mxu0 %v203
    %257 = vmatpush.msra.mxu0 %v202
    %258 = vmatpush.msra.mxu0 %v201
    %259 = vmatpush.msra.mxu0 %v200
    %260 = vmatmul.f32.gmra.mxu0 %v242
    %v261 = vpop.f32.mrf.mxu0
    %v262 = vadd.f32 1e-05, %v261
    %263 = vdwg.mxu0
    %v264 = vrsqrt.pop %v262
    %v265 = vmul.f32 %v264, %v262
    %v266 = vmul.f32 %v265, %v264
    %v267 = vmul.f32 0.5, %v266
    %v268 = vsub.f32 1.5, %v267
    %v269 = vmul.f32 %v264, %v268
    %vm270 = vweird.f32 %v262
    %vm271 = vweird.f32 %v264
    %vm272 = vmor %vm270, %vm271
    %v273 = vsel %vm272, %v264, %v269
    %v274 = vperm.slane %v273, 0
    %v275 = vmul.f32 %v231, %v274
    %v276 = vld [vmem:[%s4] sm:$0x1]
    %v278 = vperm.slane %v276, 0
    %v280 = vmul.f32 %v275, %v278
    %v281 = vld [vmem:[%s5] sm:$0x1]
    %v283 = vperm.slane %v281, 0
    %v285 = vadd.f32 %v280, %v283
    %v286 = vmax.f32 %v285, 0.0
    %v287 = vld [vmem:[%s6] sm:$0xff]
    %v288 = vld [vmem:[%s6 + $0x8] sm:$0xff]
    %v289 = vld [vmem:[%s6 + $0x10] sm:$0xff]
    %v290 = vld [vmem:[%s6 + $0x18] sm:$0xff]
    %v291 = vld [vmem:[%s6 + $0x20] sm:$0xff]
    %v292 = vld [vmem:[%s6 + $0x28] sm:$0xff]
    %v293 = vld [vmem:[%s6 + $0x30] sm:$0xff]
    %v294 = vld [vmem:[%s6 + $0x38] sm:$0xff]
    %v295 = vld [vmem:[%s6 + $0x40] sm:$0xff]
    %v296 = vld [vmem:[%s6 + $0x48] sm:$0xff]
    %v297 = vld [vmem:[%s6 + $0x50] sm:$0xff]
    %v298 = vld [vmem:[%s6 + $0x58] sm:$0xff]
    %v299 = vld [vmem:[%s7] sm:$0x3]
    %v301 = vperm.slane %v299, 0
    %v302 = vperm.slane %v299, 1
    %v306 = vsel %vm206, %v286, 0
    %308 = vmatpush.msra.mxu0 0.0
    %309 = vmatpush.msra.mxu0 0.0
    %310 = vmatpush.msra.mxu0 0.0
    %311 = vmatpush.msra.mxu0 0.0
    %312 = vmatpush.msra.mxu0 0.0
    %313 = vmatpush.msra.mxu0 0.0
    %314 = vmatpush.msra.mxu0 0.0
    %315 = vmatpush.msra.mxu0 0.0
    %316 = vmatpush.msra.mxu0 0.0
    %317 = vmatpush.msra.mxu0 0.0
    %318 = vmatpush.msra.mxu0 %v297
    %319 = vmatpush.msra.mxu0 %v295
    %320 = vmatpush.msra.mxu0 %v293
    %321 = vmatpush.msra.mxu0 %v291
    %322 = vmatpush.msra.mxu0 %v289
    %323 = vmatpush.msra.mxu0 %v287
    %324 = vmatmul.f32.gmra.mxu0 %v306
    %v325 = vpop.f32.mrf.mxu0
    %v326 = vadd.f32 %v301, %v325
    %327 = vdwg.mxu0
    %328 = vmatpush.msra.mxu0 0.0
    %329 = vmatpush.msra.mxu0 0.0
    %330 = vmatpush.msra.mxu0 0.0
    %331 = vmatpush.msra.mxu0 0.0
    %332 = vmatpush.msra.mxu0 0.0
    %333 = vmatpush.msra.mxu0 0.0
    %334 = vmatpush.msra.mxu0 0.0
    %335 = vmatpush.msra.mxu0 0.0
    %336 = vmatpush.msra.mxu0 0.0
    %337 = vmatpush.msra.mxu0 0.0
    %338 = vmatpush.msra.mxu0 %v298
    %339 = vmatpush.msra.mxu0 %v296
    %340 = vmatpush.msra.mxu0 %v294
    %341 = vmatpush.msra.mxu0 %v292
    %342 = vmatpush.msra.mxu0 %v290
    %343 = vmatpush.msra.mxu0 %v288
    %344 = vmatmul.f32.gmra.mxu0 %v306
    %v345 = vpop.f32.mrf.mxu0
    %v346 = vadd.f32 %v302, %v345
    %347 = vdwg.mxu0
    %v348 = vmax.f32 %v326, 0.0
    %v349 = vmax.f32 %v346, 0.0
    %v350 = vld [vmem:[%s1] sm:$0xf]
    %352 = vst [vmem:[#allocation1] ss:$4 sm:$0xff] %v350
    %v353 = vld.sshfl [vmem:[#allocation1] sm:$0xff pattern:$0x73625140]
    %v354 = vld.sshfl [vmem:[#allocation1 + $0x8] sm:$0xff pattern:$0x73625140]
    %v357 = vadd.f32 %v348, %v353
    %v358 = vadd.f32 %v349, %v354
    %vm359 = vcmask 1041408
    %v360 = vsel %vm359, %v357, 0.0
    %v361 = vrot.slane %v360, 4
    %v362 = vadd.f32 %v360, %v361
    %v363 = vrot.slane %v362, 2
    %v364 = vadd.f32 %v362, %v363
    %v365 = vrot.slane %v364, 1
    %v366 = vadd.f32 %v364, %v365
    %vm367 = vcmask 517120
    %v368 = vsel %vm367, %v358, 0.0
    %v369 = vrot.slane %v368, 4
    %v370 = vadd.f32 %v368, %v369
    %v371 = vrot.slane %v370, 2
    %v372 = vadd.f32 %v370, %v371
    %v373 = vrot.slane %v372, 1
    %v374 = vadd.f32 %v372, %v373
    %v375 = vmul.f32 %v366, %v198
    %v376 = vmul.f32 %v374, %v198
    %v377 = vld [vmem:[%s8] sm:$0xff]
    %v378 = vld [vmem:[%s8 + $0x8] sm:$0xff]
    %v379 = vld [vmem:[%s8 + $0x10] sm:$0xff]
    %v380 = vld [vmem:[%s8 + $0x18] sm:$0xff]
    %v381 = vld [vmem:[%s8 + $0x20] sm:$0xff]
    %v382 = vld [vmem:[%s8 + $0x28] sm:$0xff]
    %v383 = vld [vmem:[%s8 + $0x30] sm:$0xff]
    %v384 = vld [vmem:[%s8 + $0x38] sm:$0xff]
    %v385 = vld [vmem:[%s8 + $0x40] sm:$0xff]
    %v386 = vld [vmem:[%s8 + $0x48] sm:$0xff]
    %v387 = vld [vmem:[%s8 + $0x50] sm:$0xff]
    %v388 = vld [vmem:[%s8 + $0x58] sm:$0xff]
    %v389 = vld [vmem:[%s8 + $0x60] sm:$0xff]
    %v390 = vld [vmem:[%s8 + $0x68] sm:$0xff]
    %v391 = vld [vmem:[%s8 + $0x70] sm:$0xff]
    %v392 = vld [vmem:[%s8 + $0x78] sm:$0xff]
    %v393 = vld [vmem:[%s8 + $0x80] sm:$0xff]
    %v394 = vld [vmem:[%s8 + $0x88] sm:$0xff]
    %v395 = vld [vmem:[%s8 + $0x90] sm:$0xff]
    %v396 = vld [vmem:[%s8 + $0x98] sm:$0xff]
    %v397 = vld [vmem:[%s8 + $0xa0] sm:$0xff]
    %v398 = vld [vmem:[%s8 + $0xa8] sm:$0xff]
    %v399 = vld [vmem:[%s8 + $0xb0] sm:$0xff]
    %v400 = vld [vmem:[%s8 + $0xb8] sm:$0xff]
    %v401 = vld [vmem:[%s8 + $0xc0] sm:$0xff]
    %v402 = vld [vmem:[%s8 + $0xc8] sm:$0xff]
    %v403 = vld [vmem:[%s8 + $0xd0] sm:$0xff]
    %v404 = vld [vmem:[%s8 + $0xd8] sm:$0xff]
    %v405 = vld [vmem:[%s8 + $0xe0] sm:$0xff]
    %v406 = vld [vmem:[%s8 + $0xe8] sm:$0xff]
    %v407 = vld [vmem:[%s8 + $0xf0] sm:$0xff]
    %v408 = vld [vmem:[%s8 + $0xf8] sm:$0xff]
    %v409 = vld [vmem:[%s8 + $0x100] sm:$0xff]
    %v410 = vld [vmem:[%s8 + $0x108] sm:$0xff]
    %v411 = vld [vmem:[%s8 + $0x110] sm:$0xff]
    %v412 = vld [vmem:[%s8 + $0x118] sm:$0xff]
    %v413 = vld [vmem:[%s8 + $0x120] sm:$0xff]
    %v414 = vld [vmem:[%s8 + $0x128] sm:$0xff]
    %v415 = vld [vmem:[%s8 + $0x130] sm:$0xff]
    %v416 = vld [vmem:[%s8 + $0x138] sm:$0xff]
    %v417 = vld [vmem:[%s8 + $0x140] sm:$0xff]
    %v418 = vld [vmem:[%s8 + $0x148] sm:$0xff]
    %v419 = vld [vmem:[%s8 + $0x150] sm:$0xff]
    %v420 = vld [vmem:[%s8 + $0x158] sm:$0xff]
    %v421 = vld [vmem:[%s8 + $0x160] sm:$0xff]
    %v422 = vld [vmem:[%s8 + $0x168] sm:$0xff]
    %v423 = vld [vmem:[%s8 + $0x170] sm:$0xff]
    %v424 = vld [vmem:[%s8 + $0x178] sm:$0xff]
    %v426 = vsel %vm121, %v376, 0
    %428 = vmatpush.msra.mxu0 %v407
    %429 = vmatpush.msra.mxu0 %v405
    %430 = vmatpush.msra.mxu0 %v403
    %431 = vmatpush.msra.mxu0 %v401
    %432 = vmatpush.msra.mxu0 %v399
    %433 = vmatpush.msra.mxu0 %v397
    %434 = vmatpush.msra.mxu0 %v395
    %435 = vmatpush.msra.mxu0 %v393
    %436 = vmatpush.msra.mxu0 %v391
    %437 = vmatpush.msra.mxu0 %v389
    %438 = vmatpush.msra.mxu0 %v387
    %439 = vmatpush.msra.mxu0 %v385
    %440 = vmatpush.msra.mxu0 %v383
    %441 = vmatpush.msra.mxu0 %v381
    %442 = vmatpush.msra.mxu0 %v379
    %443 = vmatpush.msra.mxu0 %v377
    %444 = vmatmul.f32.gmra.mxu0 %v375
    %v445 = vpop.f32.mrf.mxu0
    %v446 = vadd.f32 0.0, %v445
    %447 = vdwg.mxu0
    %448 = vmatpush.msra.mxu0 0.0
    %449 = vmatpush.msra.mxu0 0.0
    %450 = vmatpush.msra.mxu0 0.0
    %451 = vmatpush.msra.mxu0 0.0
    %452 = vmatpush.msra.mxu0 0.0
    %453 = vmatpush.msra.mxu0 0.0
    %454 = vmatpush.msra.mxu0 0.0
    %455 = vmatpush.msra.mxu0 0.0
    %456 = vmatpush.msra.mxu0 %v423
    %457 = vmatpush.msra.mxu0 %v421
    %458 = vmatpush.msra.mxu0 %v419
    %459 = vmatpush.msra.mxu0 %v417
    %460 = vmatpush.msra.mxu0 %v415
    %461 = vmatpush.msra.mxu0 %v413
    %462 = vmatpush.msra.mxu0 %v411
    %463 = vmatpush.msra.mxu0 %v409
    %464 = vmatmul.f32.gmra.mxu0 %v426
    %v465 = vpop.f32.mrf.mxu0
    %v466 = vadd.f32 %v446, %v465
    %467 = vdwg.mxu0
    %468 = vmatpush.msra.mxu0 %v408
    %469 = vmatpush.msra.mxu0 %v406
    %470 = vmatpush.msra.mxu0 %v404
    %471 = vmatpush.msra.mxu0 %v402
    %472 = vmatpush.msra.mxu0 %v400
    %473 = vmatpush.msra.mxu0 %v398
    %474 = vmatpush.msra.mxu0 %v396
    %475 = vmatpush.msra.mxu0 %v394
    %476 = vmatpush.msra.mxu0 %v392
    %477 = vmatpush.msra.mxu0 %v390
    %478 = vmatpush.msra.mxu0 %v388
    %479 = vmatpush.msra.mxu0 %v386
    %480 = vmatpush.msra.mxu0 %v384
    %481 = vmatpush.msra.mxu0 %v382
    %482 = vmatpush.msra.mxu0 %v380
    %483 = vmatpush.msra.mxu0 %v378
    %484 = vmatmul.f32.gmra.mxu0 %v375
    %v485 = vpop.f32.mrf.mxu0
    %v486 = vadd.f32 0.0, %v485
    %487 = vdwg.mxu0
    %488 = vmatpush.msra.mxu0 0.0
    %489 = vmatpush.msra.mxu0 0.0
    %490 = vmatpush.msra.mxu0 0.0
    %491 = vmatpush.msra.mxu0 0.0
    %492 = vmatpush.msra.mxu0 0.0
    %493 = vmatpush.msra.mxu0 0.0
    %494 = vmatpush.msra.mxu0 0.0
    %495 = vmatpush.msra.mxu0 0.0
    %496 = vmatpush.msra.mxu0 %v424
    %497 = vmatpush.msra.mxu0 %v422
    %498 = vmatpush.msra.mxu0 %v420
    %499 = vmatpush.msra.mxu0 %v418
    %500 = vmatpush.msra.mxu0 %v416
    %501 = vmatpush.msra.mxu0 %v414
    %502 = vmatpush.msra.mxu0 %v412
    %503 = vmatpush.msra.mxu0 %v410
    %504 = vmatmul.f32.gmra.mxu0 %v426
    %v505 = vpop.f32.mrf.mxu0
    %v506 = vadd.f32 %v486, %v505
    %507 = vdwg.mxu0
    %v508 = vperm.slane %v466, 0
    %v509 = vperm.slane %v506, 0
    %v510 = vsub.f32 %v357, %v508
    %v511 = vsub.f32 %v358, %v509
    %v512 = vmul.f32 %v510, %v510
    %v513 = vmul.f32 %v511, %v511
    %v514 = vsel %vm359, %v512, 0.0
    %v515 = vrot.slane %v514, 4
    %v516 = vadd.f32 %v514, %v515
    %v517 = vrot.slane %v516, 2
    %v518 = vadd.f32 %v516, %v517
    %v519 = vrot.slane %v518, 1
    %v520 = vadd.f32 %v518, %v519
    %v521 = vsel %vm367, %v513, 0.0
    %v522 = vrot.slane %v521, 4
    %v523 = vadd.f32 %v521, %v522
    %v524 = vrot.slane %v523, 2
    %v525 = vadd.f32 %v523, %v524
    %v526 = vrot.slane %v525, 1
    %v527 = vadd.f32 %v525, %v526
    %v528 = vmul.f32 %v520, %v198
    %v529 = vmul.f32 %v527, %v198
    %v531 = vsel %vm121, %v529, 0
    %533 = vmatpush.msra.mxu0 %v407
    %534 = vmatpush.msra.mxu0 %v405
    %535 = vmatpush.msra.mxu0 %v403
    %536 = vmatpush.msra.mxu0 %v401
    %537 = vmatpush.msra.mxu0 %v399
    %538 = vmatpush.msra.mxu0 %v397
    %539 = vmatpush.msra.mxu0 %v395
    %540 = vmatpush.msra.mxu0 %v393
    %541 = vmatpush.msra.mxu0 %v391
    %542 = vmatpush.msra.mxu0 %v389
    %543 = vmatpush.msra.mxu0 %v387
    %544 = vmatpush.msra.mxu0 %v385
    %545 = vmatpush.msra.mxu0 %v383
    %546 = vmatpush.msra.mxu0 %v381
    %547 = vmatpush.msra.mxu0 %v379
    %548 = vmatpush.msra.mxu0 %v377
    %549 = vmatmul.f32.gmra.mxu0 %v528
    %v550 = vpop.f32.mrf.mxu0
    %v551 = vadd.f32 1e-05, %v550
    %552 = vdwg.mxu0
    %553 = vmatpush.msra.mxu0 0.0
    %554 = vmatpush.msra.mxu0 0.0
    %555 = vmatpush.msra.mxu0 0.0
    %556 = vmatpush.msra.mxu0 0.0
    %557 = vmatpush.msra.mxu0 0.0
    %558 = vmatpush.msra.mxu0 0.0
    %559 = vmatpush.msra.mxu0 0.0
    %560 = vmatpush.msra.mxu0 0.0
    %561 = vmatpush.msra.mxu0 %v423
    %562 = vmatpush.msra.mxu0 %v421
    %563 = vmatpush.msra.mxu0 %v419
    %564 = vmatpush.msra.mxu0 %v417
    %565 = vmatpush.msra.mxu0 %v415
    %566 = vmatpush.msra.mxu0 %v413
    %567 = vmatpush.msra.mxu0 %v411
    %568 = vmatpush.msra.mxu0 %v409
    %569 = vmatmul.f32.gmra.mxu0 %v531
    %v570 = vpop.f32.mrf.mxu0
    %v571 = vadd.f32 %v551, %v570
    %572 = vdwg.mxu0
    %573 = vmatpush.msra.mxu0 %v408
    %574 = vmatpush.msra.mxu0 %v406
    %575 = vmatpush.msra.mxu0 %v404
    %576 = vmatpush.msra.mxu0 %v402
    %577 = vmatpush.msra.mxu0 %v400
    %578 = vmatpush.msra.mxu0 %v398
    %579 = vmatpush.msra.mxu0 %v396
    %580 = vmatpush.msra.mxu0 %v394
    %581 = vmatpush.msra.mxu0 %v392
    %582 = vmatpush.msra.mxu0 %v390
    %583 = vmatpush.msra.mxu0 %v388
    %584 = vmatpush.msra.mxu0 %v386
    %585 = vmatpush.msra.mxu0 %v384
    %586 = vmatpush.msra.mxu0 %v382
    %587 = vmatpush.msra.mxu0 %v380
    %588 = vmatpush.msra.mxu0 %v378
    %589 = vmatmul.f32.gmra.mxu0 %v528
    %v590 = vpop.f32.mrf.mxu0
    %v591 = vadd.f32 1e-05, %v590
    %592 = vdwg.mxu0
    %593 = vmatpush.msra.mxu0 0.0
    %594 = vmatpush.msra.mxu0 0.0
    %595 = vmatpush.msra.mxu0 0.0
    %596 = vmatpush.msra.mxu0 0.0
    %597 = vmatpush.msra.mxu0 0.0
    %598 = vmatpush.msra.mxu0 0.0
    %599 = vmatpush.msra.mxu0 0.0
    %600 = vmatpush.msra.mxu0 0.0
    %601 = vmatpush.msra.mxu0 %v424
    %602 = vmatpush.msra.mxu0 %v422
    %603 = vmatpush.msra.mxu0 %v420
    %604 = vmatpush.msra.mxu0 %v418
    %605 = vmatpush.msra.mxu0 %v416
    %606 = vmatpush.msra.mxu0 %v414
    %607 = vmatpush.msra.mxu0 %v412
    %608 = vmatpush.msra.mxu0 %v410
    %609 = vmatmul.f32.gmra.mxu0 %v531
    %v610 = vpop.f32.mrf.mxu0
    %v611 = vadd.f32 %v591, %v610
    %612 = vdwg.mxu0
    %v613 = vrsqrt.pop %v571
    %v614 = vmul.f32 %v613, %v571
    %v615 = vmul.f32 %v614, %v613
    %v616 = vmul.f32 0.5, %v615
    %v617 = vsub.f32 1.5, %v616
    %v618 = vmul.f32 %v613, %v617
    %vm619 = vweird.f32 %v571
    %vm620 = vweird.f32 %v613
    %vm621 = vmor %vm619, %vm620
    %v622 = vsel %vm621, %v613, %v618
    %v623 = vrsqrt.pop %v611
    %v624 = vmul.f32 %v623, %v611
    %v625 = vmul.f32 %v624, %v623
    %v626 = vmul.f32 0.5, %v625
    %v627 = vsub.f32 1.5, %v626
    %v628 = vmul.f32 %v623, %v627
    %vm629 = vweird.f32 %v611
    %vm630 = vweird.f32 %v623
    %vm631 = vmor %vm629, %vm630
    %v632 = vsel %vm631, %v623, %v628
    %v633 = vperm.slane %v622, 0
    %v634 = vperm.slane %v632, 0
    %v635 = vmul.f32 %v510, %v633
    %v636 = vmul.f32 %v511, %v634
    %v637 = vld [vmem:[%s9] sm:$0x3]
    %v639 = vperm.slane %v637, 0
    %v640 = vperm.slane %v637, 1
    %v643 = vmul.f32 %v635, %v639
    %v644 = vmul.f32 %v636, %v640
    %v645 = vld [vmem:[%s10] sm:$0x3]
    %v647 = vperm.slane %v645, 0
    %v648 = vperm.slane %v645, 1
    %v651 = vadd.f32 %v643, %v647
    %v652 = vadd.f32 %v644, %v648
    %v653 = vld [vmem:[#allocation2] sm:$0xff]
    %v654 = vld [vmem:[#allocation2 + $0x8] sm:$0xff]
    %v655 = vld [vmem:[#allocation2 + $0x10] sm:$0xff]
    %v656 = vld [vmem:[#allocation2 + $0x18] sm:$0xff]
    %v657 = vld [vmem:[#allocation2 + $0x20] sm:$0xff]
    %v658 = vld [vmem:[#allocation2 + $0x28] sm:$0xff]
    %v659 = vld [vmem:[#allocation2 + $0x30] sm:$0xff]
    %v660 = vld [vmem:[#allocation2 + $0x38] sm:$0xff]
    %v661 = vld [vmem:[#allocation2 + $0x40] sm:$0xff]
    %v662 = vld [vmem:[#allocation2 + $0x48] sm:$0xff]
    %v663 = vld [vmem:[#allocation2 + $0x50] sm:$0xff]
    %v664 = vld [vmem:[#allocation2 + $0x58] sm:$0xff]
    %v665 = vld [vmem:[#allocation2 + $0x60] sm:$0xff]
    %v666 = vld [vmem:[#allocation2 + $0x68] sm:$0xff]
    %v667 = vld [vmem:[#allocation2 + $0x70] sm:$0xff]
    %v668 = vld [vmem:[#allocation2 + $0x78] sm:$0xff]
    %v669 = vld [vmem:[#allocation2 + $0x80] sm:$0xff]
    %v670 = vld [vmem:[#allocation2 + $0x88] sm:$0xff]
    %v671 = vld [vmem:[#allocation2 + $0x90] sm:$0xff]
    %v672 = vld [vmem:[#allocation2 + $0x98] sm:$0xff]
    %v673 = vld [vmem:[#allocation2 + $0xa0] sm:$0xff]
    %v674 = vld [vmem:[#allocation2 + $0xa8] sm:$0xff]
    %v675 = vld [vmem:[#allocation2 + $0xb0] sm:$0xff]
    %v676 = vld [vmem:[#allocation2 + $0xb8] sm:$0xff]
    %v677 = vld [vmem:[#allocation2 + $0xc0] sm:$0xff]
    %v678 = vld [vmem:[#allocation2 + $0xc8] sm:$0xff]
    %v679 = vld [vmem:[#allocation2 + $0xd0] sm:$0xff]
    %v680 = vld [vmem:[#allocation2 + $0xd8] sm:$0xff]
    %v681 = vld [vmem:[#allocation2 + $0xe0] sm:$0xff]
    %v682 = vld [vmem:[#allocation2 + $0xe8] sm:$0xff]
    %v683 = vld [vmem:[#allocation2 + $0xf0] sm:$0xff]
    %v684 = vld [vmem:[#allocation2 + $0xf8] sm:$0xff]
    %v685 = vld [vmem:[#allocation2 + $0x100] sm:$0xff]
    %v686 = vld [vmem:[#allocation2 + $0x108] sm:$0xff]
    %v687 = vld [vmem:[#allocation2 + $0x110] sm:$0xff]
    %v688 = vld [vmem:[#allocation2 + $0x118] sm:$0xff]
    %v689 = vld [vmem:[#allocation2 + $0x120] sm:$0xff]
    %v690 = vld [vmem:[#allocation2 + $0x128] sm:$0xff]
    %v691 = vld [vmem:[#allocation2 + $0x130] sm:$0xff]
    %v692 = vld [vmem:[#allocation2 + $0x138] sm:$0xff]
    %v693 = vld [vmem:[#allocation2 + $0x140] sm:$0xff]
    %v694 = vld [vmem:[#allocation2 + $0x148] sm:$0xff]
    %v695 = vld [vmem:[#allocation2 + $0x150] sm:$0xff]
    %v696 = vld [vmem:[#allocation2 + $0x158] sm:$0xff]
    %v697 = vld [vmem:[#allocation2 + $0x160] sm:$0xff]
    %v698 = vld [vmem:[#allocation2 + $0x168] sm:$0xff]
    %v699 = vld [vmem:[#allocation2 + $0x170] sm:$0xff]
    %v700 = vld [vmem:[#allocation2 + $0x178] sm:$0xff]
    %s701 = sld [smem:[#allocation5]]
    %v702 = vstv %s701
    %v704 = vsel %vm121, %v652, 0
    %706 = vmatpush.msra.mxu0 %v683
    %707 = vmatpush.msra.mxu0 %v681
    %708 = vmatpush.msra.mxu0 %v679
    %709 = vmatpush.msra.mxu0 %v677
    %710 = vmatpush.msra.mxu0 %v675
    %711 = vmatpush.msra.mxu0 %v673
    %712 = vmatpush.msra.mxu0 %v671
    %713 = vmatpush.msra.mxu0 %v669
    %714 = vmatpush.msra.mxu0 %v667
    %715 = vmatpush.msra.mxu0 %v665
    %716 = vmatpush.msra.mxu0 %v663
    %717 = vmatpush.msra.mxu0 %v661
    %718 = vmatpush.msra.mxu0 %v659
    %719 = vmatpush.msra.mxu0 %v657
    %720 = vmatpush.msra.mxu0 %v655
    %721 = vmatpush.msra.mxu0 %v653
    %722 = vmatmul.f32.gmra.mxu0 %v651
    %v723 = vpop.f32.mrf.mxu0
    %v724 = vadd.f32 %v702, %v723
    %725 = vdwg.mxu0
    %726 = vmatpush.msra.mxu0 0.0
    %727 = vmatpush.msra.mxu0 0.0
    %728 = vmatpush.msra.mxu0 0.0
    %729 = vmatpush.msra.mxu0 0.0
    %730 = vmatpush.msra.mxu0 0.0
    %731 = vmatpush.msra.mxu0 0.0
    %732 = vmatpush.msra.mxu0 0.0
    %733 = vmatpush.msra.mxu0 0.0
    %734 = vmatpush.msra.mxu0 %v699
    %735 = vmatpush.msra.mxu0 %v697
    %736 = vmatpush.msra.mxu0 %v695
    %737 = vmatpush.msra.mxu0 %v693
    %738 = vmatpush.msra.mxu0 %v691
    %739 = vmatpush.msra.mxu0 %v689
    %740 = vmatpush.msra.mxu0 %v687
    %741 = vmatpush.msra.mxu0 %v685
    %742 = vmatmul.f32.gmra.mxu0 %v704
    %v743 = vpop.f32.mrf.mxu0
    %v744 = vadd.f32 %v724, %v743
    %745 = vdwg.mxu0
    %746 = vmatpush.msra.mxu0 %v684
    %747 = vmatpush.msra.mxu0 %v682
    %748 = vmatpush.msra.mxu0 %v680
    %749 = vmatpush.msra.mxu0 %v678
    %750 = vmatpush.msra.mxu0 %v676
    %751 = vmatpush.msra.mxu0 %v674
    %752 = vmatpush.msra.mxu0 %v672
    %753 = vmatpush.msra.mxu0 %v670
    %754 = vmatpush.msra.mxu0 %v668
    %755 = vmatpush.msra.mxu0 %v666
    %756 = vmatpush.msra.mxu0 %v664
    %757 = vmatpush.msra.mxu0 %v662
    %758 = vmatpush.msra.mxu0 %v660
    %759 = vmatpush.msra.mxu0 %v658
    %760 = vmatpush.msra.mxu0 %v656
    %761 = vmatpush.msra.mxu0 %v654
    %762 = vmatmul.f32.gmra.mxu0 %v651
    %v763 = vpop.f32.mrf.mxu0
    %v764 = vadd.f32 %v702, %v763
    %765 = vdwg.mxu0
    %766 = vmatpush.msra.mxu0 0.0
    %767 = vmatpush.msra.mxu0 0.0
    %768 = vmatpush.msra.mxu0 0.0
    %769 = vmatpush.msra.mxu0 0.0
    %770 = vmatpush.msra.mxu0 0.0
    %771 = vmatpush.msra.mxu0 0.0
    %772 = vmatpush.msra.mxu0 0.0
    %773 = vmatpush.msra.mxu0 0.0
    %774 = vmatpush.msra.mxu0 %v700
    %775 = vmatpush.msra.mxu0 %v698
    %776 = vmatpush.msra.mxu0 %v696
    %777 = vmatpush.msra.mxu0 %v694
    %778 = vmatpush.msra.mxu0 %v692
    %779 = vmatpush.msra.mxu0 %v690
    %780 = vmatpush.msra.mxu0 %v688
    %781 = vmatpush.msra.mxu0 %v686
    %782 = vmatmul.f32.gmra.mxu0 %v704
    %v783 = vpop.f32.mrf.mxu0
    %v784 = vadd.f32 %v764, %v783
    %785 = vdwg.mxu0
    %s786 = scalar_lea.vmem [#allocation2], 384
    %v787 = vld [vmem:[%s786] sm:$0xff]
    %v788 = vld [vmem:[%s786 + $0x8] sm:$0xff]
    %v789 = vld [vmem:[%s786 + $0x10] sm:$0xff]
    %v790 = vld [vmem:[%s786 + $0x18] sm:$0xff]
    %v791 = vld [vmem:[%s786 + $0x20] sm:$0xff]
    %v792 = vld [vmem:[%s786 + $0x28] sm:$0xff]
    %v793 = vld [vmem:[%s786 + $0x30] sm:$0xff]
    %v794 = vld [vmem:[%s786 + $0x38] sm:$0xff]
    %v795 = vld [vmem:[%s786 + $0x40] sm:$0xff]
    %v796 = vld [vmem:[%s786 + $0x48] sm:$0xff]
    %v797 = vld [vmem:[%s786 + $0x50] sm:$0xff]
    %v798 = vld [vmem:[%s786 + $0x58] sm:$0xff]
    %v799 = vld [vmem:[%s786 + $0x60] sm:$0xff]
    %v800 = vld [vmem:[%s786 + $0x68] sm:$0xff]
    %v801 = vld [vmem:[%s786 + $0x70] sm:$0xff]
    %v802 = vld [vmem:[%s786 + $0x78] sm:$0xff]
    %v803 = vld [vmem:[%s786 + $0x80] sm:$0xff]
    %v804 = vld [vmem:[%s786 + $0x88] sm:$0xff]
    %v805 = vld [vmem:[%s786 + $0x90] sm:$0xff]
    %v806 = vld [vmem:[%s786 + $0x98] sm:$0xff]
    %v807 = vld [vmem:[%s786 + $0xa0] sm:$0xff]
    %v808 = vld [vmem:[%s786 + $0xa8] sm:$0xff]
    %v809 = vld [vmem:[%s786 + $0xb0] sm:$0xff]
    %v810 = vld [vmem:[%s786 + $0xb8] sm:$0xff]
    %v811 = vld [vmem:[%s786 + $0xc0] sm:$0xff]
    %v812 = vld [vmem:[%s786 + $0xc8] sm:$0xff]
    %v813 = vld [vmem:[%s786 + $0xd0] sm:$0xff]
    %v814 = vld [vmem:[%s786 + $0xd8] sm:$0xff]
    %v815 = vld [vmem:[%s786 + $0xe0] sm:$0xff]
    %v816 = vld [vmem:[%s786 + $0xe8] sm:$0xff]
    %v817 = vld [vmem:[%s786 + $0xf0] sm:$0xff]
    %v818 = vld [vmem:[%s786 + $0xf8] sm:$0xff]
    %v819 = vld [vmem:[%s786 + $0x100] sm:$0xff]
    %v820 = vld [vmem:[%s786 + $0x108] sm:$0xff]
    %v821 = vld [vmem:[%s786 + $0x110] sm:$0xff]
    %v822 = vld [vmem:[%s786 + $0x118] sm:$0xff]
    %v823 = vld [vmem:[%s786 + $0x120] sm:$0xff]
    %v824 = vld [vmem:[%s786 + $0x128] sm:$0xff]
    %v825 = vld [vmem:[%s786 + $0x130] sm:$0xff]
    %v826 = vld [vmem:[%s786 + $0x138] sm:$0xff]
    %v827 = vld [vmem:[%s786 + $0x140] sm:$0xff]
    %v828 = vld [vmem:[%s786 + $0x148] sm:$0xff]
    %v829 = vld [vmem:[%s786 + $0x150] sm:$0xff]
    %v830 = vld [vmem:[%s786 + $0x158] sm:$0xff]
    %v831 = vld [vmem:[%s786 + $0x160] sm:$0xff]
    %v832 = vld [vmem:[%s786 + $0x168] sm:$0xff]
    %v833 = vld [vmem:[%s786 + $0x170] sm:$0xff]
    %v834 = vld [vmem:[%s786 + $0x178] sm:$0xff]
    %s835 = sld [smem:[#allocation5 + $0x1]]
    %v836 = vstv %s835
    %837 = vmatpush.msra.mxu0 %v817
    %838 = vmatpush.msra.mxu0 %v815
    %839 = vmatpush.msra.mxu0 %v813
    %840 = vmatpush.msra.mxu0 %v811
    %841 = vmatpush.msra.mxu0 %v809
    %842 = vmatpush.msra.mxu0 %v807
    %843 = vmatpush.msra.mxu0 %v805
    %844 = vmatpush.msra.mxu0 %v803
    %845 = vmatpush.msra.mxu0 %v801
    %846 = vmatpush.msra.mxu0 %v799
    %847 = vmatpush.msra.mxu0 %v797
    %848 = vmatpush.msra.mxu0 %v795
    %849 = vmatpush.msra.mxu0 %v793
    %850 = vmatpush.msra.mxu0 %v791
    %851 = vmatpush.msra.mxu0 %v789
    %852 = vmatpush.msra.mxu0 %v787
    %853 = vmatmul.f32.gmra.mxu0 %v651
    %v854 = vpop.f32.mrf.mxu0
    %v855 = vadd.f32 %v836, %v854
    %856 = vdwg.mxu0
    %857 = vmatpush.msra.mxu0 0.0
    %858 = vmatpush.msra.mxu0 0.0
    %859 = vmatpush.msra.mxu0 0.0
    %860 = vmatpush.msra.mxu0 0.0
    %861 = vmatpush.msra.mxu0 0.0
    %862 = vmatpush.msra.mxu0 0.0
    %863 = vmatpush.msra.mxu0 0.0
    %864 = vmatpush.msra.mxu0 0.0
    %865 = vmatpush.msra.mxu0 %v833
    %866 = vmatpush.msra.mxu0 %v831
    %867 = vmatpush.msra.mxu0 %v829
    %868 = vmatpush.msra.mxu0 %v827
    %869 = vmatpush.msra.mxu0 %v825
    %870 = vmatpush.msra.mxu0 %v823
    %871 = vmatpush.msra.mxu0 %v821
    %872 = vmatpush.msra.mxu0 %v819
    %873 = vmatmul.f32.gmra.mxu0 %v704
    %v874 = vpop.f32.mrf.mxu0
    %v875 = vadd.f32 %v855, %v874
    %876 = vdwg.mxu0
    %877 = vmatpush.msra.mxu0 %v818
    %878 = vmatpush.msra.mxu0 %v816
    %879 = vmatpush.msra.mxu0 %v814
    %880 = vmatpush.msra.mxu0 %v812
    %881 = vmatpush.msra.mxu0 %v810
    %882 = vmatpush.msra.mxu0 %v808
    %883 = vmatpush.msra.mxu0 %v806
    %884 = vmatpush.msra.mxu0 %v804
    %885 = vmatpush.msra.mxu0 %v802
    %886 = vmatpush.msra.mxu0 %v800
    %887 = vmatpush.msra.mxu0 %v798
    %888 = vmatpush.msra.mxu0 %v796
    %889 = vmatpush.msra.mxu0 %v794
    %890 = vmatpush.msra.mxu0 %v792
    %891 = vmatpush.msra.mxu0 %v790
    %892 = vmatpush.msra.mxu0 %v788
    %893 = vmatmul.f32.gmra.mxu0 %v651
    %v894 = vpop.f32.mrf.mxu0
    %v895 = vadd.f32 %v836, %v894
    %896 = vdwg.mxu0
    %897 = vmatpush.msra.mxu0 0.0
    %898 = vmatpush.msra.mxu0 0.0
    %899 = vmatpush.msra.mxu0 0.0
    %900 = vmatpush.msra.mxu0 0.0
    %901 = vmatpush.msra.mxu0 0.0
    %902 = vmatpush.msra.mxu0 0.0
    %903 = vmatpush.msra.mxu0 0.0
    %904 = vmatpush.msra.mxu0 0.0
    %905 = vmatpush.msra.mxu0 %v834
    %906 = vmatpush.msra.mxu0 %v832
    %907 = vmatpush.msra.mxu0 %v830
    %908 = vmatpush.msra.mxu0 %v828
    %909 = vmatpush.msra.mxu0 %v826
    %910 = vmatpush.msra.mxu0 %v824
    %911 = vmatpush.msra.mxu0 %v822
    %912 = vmatpush.msra.mxu0 %v820
    %913 = vmatmul.f32.gmra.mxu0 %v704
    %v914 = vpop.f32.mrf.mxu0
    %v915 = vadd.f32 %v895, %v914
    %916 = vdwg.mxu0
    %s917 = scalar_lea.vmem [#allocation2], 768
    %v918 = vld [vmem:[%s917] sm:$0xff]
    %v919 = vld [vmem:[%s917 + $0x8] sm:$0xff]
    %v920 = vld [vmem:[%s917 + $0x10] sm:$0xff]
    %v921 = vld [vmem:[%s917 + $0x18] sm:$0xff]
    %v922 = vld [vmem:[%s917 + $0x20] sm:$0xff]
    %v923 = vld [vmem:[%s917 + $0x28] sm:$0xff]
    %v924 = vld [vmem:[%s917 + $0x30] sm:$0xff]
    %v925 = vld [vmem:[%s917 + $0x38] sm:$0xff]
    %v926 = vld [vmem:[%s917 + $0x40] sm:$0xff]
    %v927 = vld [vmem:[%s917 + $0x48] sm:$0xff]
    %v928 = vld [vmem:[%s917 + $0x50] sm:$0xff]
    %v929 = vld [vmem:[%s917 + $0x58] sm:$0xff]
    %v930 = vld [vmem:[%s917 + $0x60] sm:$0xff]
    %v931 = vld [vmem:[%s917 + $0x68] sm:$0xff]
    %v932 = vld [vmem:[%s917 + $0x70] sm:$0xff]
    %v933 = vld [vmem:[%s917 + $0x78] sm:$0xff]
    %v934 = vld [vmem:[%s917 + $0x80] sm:$0xff]
    %v935 = vld [vmem:[%s917 + $0x88] sm:$0xff]
    %v936 = vld [vmem:[%s917 + $0x90] sm:$0xff]
    %v937 = vld [vmem:[%s917 + $0x98] sm:$0xff]
    %v938 = vld [vmem:[%s917 + $0xa0] sm:$0xff]
    %v939 = vld [vmem:[%s917 + $0xa8] sm:$0xff]
    %v940 = vld [vmem:[%s917 + $0xb0] sm:$0xff]
    %v941 = vld [vmem:[%s917 + $0xb8] sm:$0xff]
    %v942 = vld [vmem:[%s917 + $0xc0] sm:$0xff]
    %v943 = vld [vmem:[%s917 + $0xc8] sm:$0xff]
    %v944 = vld [vmem:[%s917 + $0xd0] sm:$0xff]
    %v945 = vld [vmem:[%s917 + $0xd8] sm:$0xff]
    %v946 = vld [vmem:[%s917 + $0xe0] sm:$0xff]
    %v947 = vld [vmem:[%s917 + $0xe8] sm:$0xff]
    %v948 = vld [vmem:[%s917 + $0xf0] sm:$0xff]
    %v949 = vld [vmem:[%s917 + $0xf8] sm:$0xff]
    %v950 = vld [vmem:[%s917 + $0x100] sm:$0xff]
    %v951 = vld [vmem:[%s917 + $0x108] sm:$0xff]
    %v952 = vld [vmem:[%s917 + $0x110] sm:$0xff]
    %v953 = vld [vmem:[%s917 + $0x118] sm:$0xff]
    %v954 = vld [vmem:[%s917 + $0x120] sm:$0xff]
    %v955 = vld [vmem:[%s917 + $0x128] sm:$0xff]
    %v956 = vld [vmem:[%s917 + $0x130] sm:$0xff]
    %v957 = vld [vmem:[%s917 + $0x138] sm:$0xff]
    %v958 = vld [vmem:[%s917 + $0x140] sm:$0xff]
    %v959 = vld [vmem:[%s917 + $0x148] sm:$0xff]
    %v960 = vld [vmem:[%s917 + $0x150] sm:$0xff]
    %v961 = vld [vmem:[%s917 + $0x158] sm:$0xff]
    %v962 = vld [vmem:[%s917 + $0x160] sm:$0xff]
    %v963 = vld [vmem:[%s917 + $0x168] sm:$0xff]
    %v964 = vld [vmem:[%s917 + $0x170] sm:$0xff]
    %v965 = vld [vmem:[%s917 + $0x178] sm:$0xff]
    %s966 = sld [smem:[#allocation5 + $0x2]]
    %v967 = vstv %s966
    %968 = vmatpush.msra.mxu0 %v948
    %969 = vmatpush.msra.mxu0 %v946
    %970 = vmatpush.msra.mxu0 %v944
    %971 = vmatpush.msra.mxu0 %v942
    %972 = vmatpush.msra.mxu0 %v940
    %973 = vmatpush.msra.mxu0 %v938
    %974 = vmatpush.msra.mxu0 %v936
    %975 = vmatpush.msra.mxu0 %v934
    %976 = vmatpush.msra.mxu0 %v932
    %977 = vmatpush.msra.mxu0 %v930
    %978 = vmatpush.msra.mxu0 %v928
    %979 = vmatpush.msra.mxu0 %v926
    %980 = vmatpush.msra.mxu0 %v924
    %981 = vmatpush.msra.mxu0 %v922
    %982 = vmatpush.msra.mxu0 %v920
    %983 = vmatpush.msra.mxu0 %v918
    %984 = vmatmul.f32.gmra.mxu0 %v651
    %v985 = vpop.f32.mrf.mxu0
    %v986 = vadd.f32 %v967, %v985
    %987 = vdwg.mxu0
    %988 = vmatpush.msra.mxu0 0.0
    %989 = vmatpush.msra.mxu0 0.0
    %990 = vmatpush.msra.mxu0 0.0
    %991 = vmatpush.msra.mxu0 0.0
    %992 = vmatpush.msra.mxu0 0.0
    %993 = vmatpush.msra.mxu0 0.0
    %994 = vmatpush.msra.mxu0 0.0
    %995 = vmatpush.msra.mxu0 0.0
    %996 = vmatpush.msra.mxu0 %v964
    %997 = vmatpush.msra.mxu0 %v962
    %998 = vmatpush.msra.mxu0 %v960
    %999 = vmatpush.msra.mxu0 %v958
    %1000 = vmatpush.msra.mxu0 %v956
    %1001 = vmatpush.msra.mxu0 %v954
    %1002 = vmatpush.msra.mxu0 %v952
    %1003 = vmatpush.msra.mxu0 %v950
    %1004 = vmatmul.f32.gmra.mxu0 %v704
    %v1005 = vpop.f32.mrf.mxu0
    %v1006 = vadd.f32 %v986, %v1005
    %1007 = vdwg.mxu0
    %1008 = vmatpush.msra.mxu0 %v949
    %1009 = vmatpush.msra.mxu0 %v947
    %1010 = vmatpush.msra.mxu0 %v945
    %1011 = vmatpush.msra.mxu0 %v943
    %1012 = vmatpush.msra.mxu0 %v941
    %1013 = vmatpush.msra.mxu0 %v939
    %1014 = vmatpush.msra.mxu0 %v937
    %1015 = vmatpush.msra.mxu0 %v935
    %1016 = vmatpush.msra.mxu0 %v933
    %1017 = vmatpush.msra.mxu0 %v931
    %1018 = vmatpush.msra.mxu0 %v929
    %1019 = vmatpush.msra.mxu0 %v927
    %1020 = vmatpush.msra.mxu0 %v925
    %1021 = vmatpush.msra.mxu0 %v923
    %1022 = vmatpush.msra.mxu0 %v921
    %1023 = vmatpush.msra.mxu0 %v919
    %1024 = vmatmul.f32.gmra.mxu0 %v651
    %v1025 = vpop.f32.mrf.mxu0
    %v1026 = vadd.f32 %v967, %v1025
    %1027 = vdwg.mxu0
    %1028 = vmatpush.msra.mxu0 0.0
    %1029 = vmatpush.msra.mxu0 0.0
    %1030 = vmatpush.msra.mxu0 0.0
    %1031 = vmatpush.msra.mxu0 0.0
    %1032 = vmatpush.msra.mxu0 0.0
    %1033 = vmatpush.msra.mxu0 0.0
    %1034 = vmatpush.msra.mxu0 0.0
    %1035 = vmatpush.msra.mxu0 0.0
    %1036 = vmatpush.msra.mxu0 %v965
    %1037 = vmatpush.msra.mxu0 %v963
    %1038 = vmatpush.msra.mxu0 %v961
    %1039 = vmatpush.msra.mxu0 %v959
    %1040 = vmatpush.msra.mxu0 %v957
    %1041 = vmatpush.msra.mxu0 %v955
    %1042 = vmatpush.msra.mxu0 %v953
    %1043 = vmatpush.msra.mxu0 %v951
    %1044 = vmatmul.f32.gmra.mxu0 %v704
    %v1045 = vpop.f32.mrf.mxu0
    %v1046 = vadd.f32 %v1026, %v1045
    %1047 = vdwg.mxu0
    %v1048 = vmax.f32 %v744, %v875
    %v1049 = vmax.f32 %v784, %v915
    %v1050 = vmax.f32 %v1048, %v1006
    %v1051 = vmax.f32 %v1049, %v1046
    %v1052 = vsub.f32 %v744, %v1050
    %v1053 = vsub.f32 %v784, %v1051
    %v1054 = vmul.f32 %v1052, 1.442695
    %v1055 = vpow.pop %v1054
    %v1056 = vmul.f32 %v1053, 1.442695
    %v1057 = vpow.pop %v1056
    %v1058 = vsub.f32 %v875, %v1050
    %v1059 = vsub.f32 %v915, %v1051
    %v1060 = vmul.f32 %v1058, 1.442695
    %v1061 = vpow.pop %v1060
    %v1062 = vmul.f32 %v1059, 1.442695
    %v1063 = vpow.pop %v1062
    %v1064 = vsub.f32 %v1006, %v1050
    %v1065 = vsub.f32 %v1046, %v1051
    %v1066 = vmul.f32 %v1064, 1.442695
    %v1067 = vpow.pop %v1066
    %v1068 = vmul.f32 %v1065, 1.442695
    %v1069 = vpow.pop %v1068
    %v1070 = vadd.f32 %v1055, %v1061
    %v1071 = vadd.f32 %v1057, %v1063
    %v1072 = vadd.f32 %v1070, %v1067
    %v1073 = vadd.f32 %v1071, %v1069
    %v1074 = vrcp.pop %v1072
    %v1075 = vrcp.pop %v1073
    %v1076 = vmul.f32 %v1055, %v1074
    %v1077 = vmul.f32 %v1057, %v1075
    %v1080 = vrot.slane %v1077, 6
    %v1081 = vsel %vm359, %v1076, %v1080
    %vm1083 = vcmask 519170
    %vm1084 = vmor %vm1083, %vm359
    %1085 = vst.msk [vmem:[%s13] sm:$0xf] %vm1084, %v1081
    %v1086 = vmul.f32 %v1061, %v1074
    %v1087 = vmul.f32 %v1063, %v1075
    %v1090 = vrot.slane %v1087, 6
    %v1091 = vsel %vm359, %v1086, %v1090
    %s1093 = scalar_lea.vmem %s13, 4
    %1094 = vst.msk [vmem:[%s1093] sm:$0xf] %vm1084, %v1091
    %v1095 = vmul.f32 %v1067, %v1074
    %v1096 = vmul.f32 %v1069, %v1075
    %v1099 = vrot.slane %v1096, 6
    %v1100 = vsel %vm359, %v1095, %v1099
    %s1102 = scalar_lea.vmem %s13, 8
    %1103 = vst.msk [vmem:[%s1102] sm:$0xf] %vm1084, %v1100
    // Predicated region
    $region62: #{attention_forward.1} parent=1 // pred_check
      _
    $region63: #{attention_forward.1} parent=1 // pred_check_branch
      %1105 = sbr.rel (0) target = $region65
    $region64: #{attention_forward.1} parent=1 // pred_region
      _
    $region65: #{attention_forward.1} parent=1 // pred_fallthru
      _
    // Predicated region
    $region66: #{attention_forward.1} parent=1 // pred_check
      _
    $region67: #{attention_forward.1} parent=1 // pred_check_branch
      %1107 = sbr.rel (0) target = $region69
    $region68: #{attention_forward.1} parent=1 // pred_region
      _
    $region69: #{attention_forward.1} parent=1 // pred_fallthru
      _
    %1108 = vsyncpa [#allocation3], 1
    %1109 = vsyncpa [#allocation4], 1

</llo_original>
